<compile_context>
chip_gen: v5e
topology: v5e:2x2
jax: 0.10.0
libtpu: 0.0.40
codegen_flags: <defaults>
</compile_context>

<pallas_src>
import numpy as np
import jax
import jax.numpy as jnp
from jax import lax
from jax.experimental import pallas as pl
from jax.experimental.pallas import tpu as pltpu


def _round_up(x, m):
    return ((x + m - 1) // m) * m


def _cdiv(a, b):
    return (a + b - 1) // b


def _edge_diff_onehot_kernel(src_ref, dst_ref, node_ref, out_ref):
    """One edge-tile per grid step.

    src_ref / dst_ref : VMEM (tile_e, 1) int32   edge endpoints for this tile
    node_ref          : VMEM (batch, nodes, states) resident node table
    out_ref           : VMEM (batch, tile_e, states) output tile
    """
    batch, nodes, _ = node_ref.shape
    tile_e = out_ref.shape[1]
    dtype = node_ref.dtype

    # +-1 one-hot selection matrix: sel[e, n] = (n == src[e]) - (n == dst[e]).
    # (tile_e, 1) id blocks broadcast along lanes against the node iota, so no
    # relayout / transpose is needed.  Out-of-range ids select nothing.
    node_ids = lax.broadcasted_iota(jnp.int32, (tile_e, nodes), 1)
    sel = (jnp.where(node_ids == src_ref[...], 1.0, 0.0)
           - jnp.where(node_ids == dst_ref[...], 1.0, 0.0)).astype(dtype)

    # One MXU matmul per batch element fuses gather + subtract:
    #   out[b, e, :] = node[b, src[e], :] - node[b, dst[e], :]
    # `batch` is small and static -> Python loop unrolls at trace time.
    for b in range(batch):
        out_ref[b, :, :] = jnp.dot(
            sel, node_ref[b, :, :],
            preferred_element_type=jnp.float32,
        ).astype(out_ref.dtype)


def edge_attr_pallas(node_attr, edge_index, *, tile_e=256, use_pallas=None):
    """node_attr: (batch, nodes, states); edge_index: (2, E) int.

    Returns edge_attr: (batch, E, states) = node_attr[:, src] - node_attr[:, dst].
    `use_pallas=None` -> auto heuristic; True forces the kernel (still falls
    back if the node table cannot stay resident in VMEM); False forces XLA.
    """
    batch, nodes, states = node_attr.shape
    num_edges = int(edge_index.shape[1])
    dtype = node_attr.dtype
    itemsize = jnp.dtype(dtype).itemsize

    if num_edges == 0:                       # guard: empty graph
        return jnp.zeros((batch, 0, states), dtype)

    src = edge_index[0].astype(jnp.int32)
    dst = edge_index[1].astype(jnp.int32)

    # ---- edge tiling: big tiles amortize per-step overhead, but keep >= ~8
    # grid steps for large edge counts so the "parallel" axis can be split
    # across TensorCores on v7x instead of collapsing to one serial step.
    sub, lane = 8, 128
    tile_e = int(tile_e)
    if num_edges >= 8 * 128:
        tile_e = min(tile_e, _round_up(_cdiv(num_edges, 8), sub))
    tile_e = max(sub, min(tile_e, _round_up(num_edges, sub)))
    e_pad = _round_up(num_edges, tile_e)
    grid_steps = e_pad // tile_e

    # ---- VMEM budget with (8,128)-tile layout padding of the minor `states`
    # axis.  Node table is DMA'd once (constant index_map) but budgeted at 2x
    # for the pipeline's default double buffer.
    # TODO(synk): pipeline_mode=pl.Buffered(1) on the node BlockSpec would
    # halve the resident footprint once verified on the target JAX version.
    states_pad = _round_up(states, lane)
    node_vmem = batch * _round_up(nodes, sub) * states_pad * itemsize
    out_tile_vmem = batch * tile_e * states_pad * itemsize
    sel_vmem = tile_e * _round_up(nodes, lane) * 4
    ids_vmem = 2 * 2 * tile_e * lane * 4
    vmem_need = 2 * node_vmem + 2 * out_tile_vmem + 3 * sel_vmem + ids_vmem + (2 << 20)

    try:
        vmem_cap = int(pltpu.get_tpu_info().vmem_capacity_bytes)
    except Exception:
        vmem_cap = 64 << 20                  # v7x per-TensorCore lower bound
    vmem_budget = int(0.75 * vmem_cap)
    vmem_limit = int(min(max(vmem_need, 32 << 20), vmem_budget))

    if use_pallas is None:
        total_bytes = (batch * nodes * states + batch * num_edges * states) * itemsize
        use_pallas = (
            vmem_need <= vmem_budget          # node table stays VMEM-resident
            and nodes <= 4096                 # one-hot matmul FLOPs stay trivial
            and total_bytes >= (1 << 20)      # pallas_call overhead worth paying
        )

    if (not use_pallas) or vmem_need > vmem_budget:
        # TODO(synk): node tables exceeding VMEM need a pl.ANY + manual
        # double-buffered DMA row-gather kernel; use the fused XLA gather here.
        return (jnp.take(node_attr, src, axis=1)
                - jnp.take(node_attr, dst, axis=1))

    # Edge ids as (e_pad, 1) columns -> (tile_e, 1) VMEM blocks (sublane axis),
    # padded with node 0 (harmless: padded rows are sliced off below).
    src_col = jnp.zeros((e_pad, 1), jnp.int32).at[:num_edges, 0].set(src)
    dst_col = jnp.zeros((e_pad, 1), jnp.int32).at[:num_edges, 0].set(dst)

    grid_spec = pltpu.PrefetchScalarGridSpec(
        num_scalar_prefetch=0,
        grid=(grid_steps,),
        in_specs=[
            pl.BlockSpec((tile_e, 1), lambda e: (e, 0)),              # src ids
            pl.BlockSpec((tile_e, 1), lambda e: (e, 0)),              # dst ids
            # whole node tensor, constant block index -> DMA'd once, resident
            pl.BlockSpec((batch, nodes, states), lambda e: (0, 0, 0)),
        ],
        # output emitted directly in the final (batch, E, states) layout
        out_specs=pl.BlockSpec((batch, tile_e, states), lambda e: (0, e, 0)),
    )

    out_padded = pl.pallas_call(
        _edge_diff_onehot_kernel,
        out_shape=jax.ShapeDtypeStruct((batch, e_pad, states), dtype),
        grid_spec=grid_spec,
        compiler_params=pltpu.CompilerParams(
            dimension_semantics=("parallel",),
            vmem_limit_bytes=vmem_limit,
        ),
    )(src_col, dst_col, node_attr)

    if e_pad == num_edges:
        return out_padded
    return out_padded[:, :num_edges, :]


class RCPreprocessor:
    """JAX/Pallas port of neuromancer.gnn.RCPreprocessor."""

    def __init__(self, edge_index, nodes=None, input_key_map=None,
                 use_pallas=None, tile_e=256):
        self.edge_index = jnp.asarray(edge_index, dtype=jnp.int32)
        if nodes is not None:
            self.nodes = int(nodes)
        else:
            # host sync only when node count is not provided (mirrors the
            # torch.max(edge_index).item() + 1 of the original module)
            self.nodes = int(jax.device_get(jnp.max(self.edge_index))) + 1
        self.input_key_map = dict(input_key_map or {})
        self.use_pallas = use_pallas
        self.tile_e = tile_e

    def __call__(self, data):
        node_attr = data[self.input_key_map['x0']]
        if node_attr.ndim == 3:
            node_attr = node_attr[:, 0]
        batch, nodestates = node_attr.shape
        assert nodestates % self.nodes == 0, (
            f"nodestates ({nodestates}) must be divisible by nodes ({self.nodes})")
        states = nodestates // self.nodes
        node_attr = node_attr.reshape(batch, self.nodes, states)
        edge_attr = edge_attr_pallas(node_attr, self.edge_index,
                                     tile_e=self.tile_e, use_pallas=self.use_pallas)
        return {'node_attr': node_attr, 'edge_attr': edge_attr,
                'edge_index': self.edge_index}


if __name__ == "__main__":
    key = jax.random.PRNGKey(0)

    batch, seq, nodes, states = 4, 6, 64, 8
    nodestates = nodes * states                       # 512

    # Deterministic bidirectional ring graph -> 2*nodes = 128 edges.
    s = np.arange(nodes, dtype=np.int32)
    d = (s + 1) % nodes
    edge_index = np.stack([np.concatenate([s, d]),
                           np.concatenate([d, s])], axis=0)          # (2, 128)

    # 3-D input exercises the `node_attr[:, 0]` branch.  Values are quantized
    # to bf16-representable f32 so the one-hot MXU matmul matches the pure-JAX
    # reference to f32 rounding regardless of internal multiply precision.
    x0 = jax.random.normal(key, (batch, seq, nodestates), dtype=jnp.float32)
    x0 = x0.astype(jnp.bfloat16).astype(jnp.float32)

    # Force the Pallas path so the kernel is exercised at these small shapes
    # (the auto heuristic would route tiny problems to the XLA fallback).
    pre = RCPreprocessor(edge_index, nodes=nodes,
                         input_key_map={'x0': 'x0'}, use_pallas=True)
    out = pre({'x0': x0})

    node_attr = jax.block_until_ready(out['node_attr'])
    edge_attr = jax.block_until_ready(out['edge_attr'])

    # Pure-JAX reference check of the gather + subtract.
    na_ref = x0[:, 0].reshape(batch, nodes, states)
    ea_ref = na_ref[:, edge_index[0], :] - na_ref[:, edge_index[1], :]
    assert node_attr.shape == (batch, nodes, states)
    assert edge_attr.shape == (batch, edge_index.shape[1], states)
    assert np.allclose(np.asarray(node_attr), np.asarray(na_ref), atol=1e-6)
    assert np.allclose(np.asarray(edge_attr), np.asarray(ea_ref), atol=1e-6)

    # Auto-heuristic path (routes this tiny problem to the fused XLA gather).
    out_auto = RCPreprocessor(edge_index, nodes=nodes,
                              input_key_map={'x0': 'x0'})({'x0': x0})
    ea_auto = jax.block_until_ready(out_auto['edge_attr'])
    assert np.allclose(np.asarray(ea_auto), np.asarray(ea_ref), atol=1e-6)

    print("KERNEL_OK")
</pallas_src>

<mosaic_0001>
module attributes {stable_mosaic.version = 11 : i64} {
  func.func @_edge_diff_onehot_kernel(%arg0: i32, %arg1: memref<128x1xi32, #tpu.memory_space<vmem>>, %arg2: memref<128x1xi32, #tpu.memory_space<vmem>>, %arg3: memref<4x64x8xf32, #tpu.memory_space<vmem>>, %arg4: memref<4x128x8xf32, #tpu.memory_space<vmem>>) attributes {dimension_semantics = [#tpu.dimension_semantics<parallel>], iteration_bounds = array<i64: 1>, scalar_prefetch = 0 : i64, scratch_operands = 0 : i64, tpu.core_type = #tpu.core_type<tc>, window_params = [{transform_indices = @transform_0, window_bounds = array<i64: 128, 1>}, {transform_indices = @transform_1, window_bounds = array<i64: 128, 1>}, {pipeline_mode = #tpu.pipeline_mode<synchronous>, transform_indices = @transform_2, window_bounds = array<i64: 4, 64, 8>}, {transform_indices = @transform_3, window_bounds = array<i64: 4, 128, 8>}]} {
    %0 = tpu.iota {dimensions = array<i32: 1>} : vector<128x64xi32>
    %c0 = arith.constant 0 : index
    %c0_0 = arith.constant 0 : index
    %1 = vector.load %arg1[%c0, %c0_0] : memref<128x1xi32, #tpu.memory_space<vmem>>, vector<128x1xi32>
    %2 = vector.broadcast %1 : vector<128x1xi32> to vector<128x64xi32>
    %3 = arith.cmpi eq, %0, %2 : vector<128x64xi32>
    %cst = arith.constant 1.000000e+00 : f32
    %cst_1 = arith.constant 0.000000e+00 : f32
    %4 = vector.broadcast %cst : f32 to vector<128x64xf32>
    %5 = vector.broadcast %cst_1 : f32 to vector<128x64xf32>
    %6 = arith.select %3, %4, %5 : vector<128x64xi1>, vector<128x64xf32>
    %c0_2 = arith.constant 0 : index
    %c0_3 = arith.constant 0 : index
    %7 = vector.load %arg2[%c0_2, %c0_3] : memref<128x1xi32, #tpu.memory_space<vmem>>, vector<128x1xi32>
    %8 = vector.broadcast %7 : vector<128x1xi32> to vector<128x64xi32>
    %9 = arith.cmpi eq, %0, %8 : vector<128x64xi32>
    %cst_4 = arith.constant 1.000000e+00 : f32
    %cst_5 = arith.constant 0.000000e+00 : f32
    %10 = vector.broadcast %cst_4 : f32 to vector<128x64xf32>
    %11 = vector.broadcast %cst_5 : f32 to vector<128x64xf32>
    %12 = arith.select %9, %10, %11 : vector<128x64xi1>, vector<128x64xf32>
    %13 = arith.subf %6, %12 : vector<128x64xf32>
    %c0_6 = arith.constant 0 : index
    %c0_7 = arith.constant 0 : index
    %c0_8 = arith.constant 0 : index
    %14 = vector.load %arg3[%c0_6, %c0_7, %c0_8] : memref<4x64x8xf32, #tpu.memory_space<vmem>>, vector<1x64x8xf32>
    %15 = vector.shape_cast %14 : vector<1x64x8xf32> to vector<64x8xf32>
    %cst_9 = arith.constant dense<0.000000e+00> : vector<128x8xf32>
    %16 = tpu.matmul %13, %15, %cst_9 {dimension_numbers = #tpu.dot_dimension_numbers<[1], [0], [0], [1], [0, 0, 1, 1], [], []>} : vector<128x64xf32>, vector<64x8xf32>, vector<128x8xf32> -> vector<128x8xf32>
    %c0_10 = arith.constant 0 : index
    %c0_11 = arith.constant 0 : index
    %c0_12 = arith.constant 0 : index
    %17 = vector.load %arg4[%c0_10, %c0_11, %c0_12] : memref<4x128x8xf32, #tpu.memory_space<vmem>>, vector<1x128x8xf32>
    %18 = vector.shape_cast %17 : vector<1x128x8xf32> to vector<128x8xf32>
    %19 = vector.shape_cast %16 : vector<128x8xf32> to vector<1x128x8xf32>
    tpu.vector_store %arg4[%c0_10, %c0_11, %c0_12], %19 {strides = array<i32>} : memref<4x128x8xf32, #tpu.memory_space<vmem>>, vector<1x128x8xf32>,
    %c1 = arith.constant 1 : index
    %c0_13 = arith.constant 0 : index
    %c0_14 = arith.constant 0 : index
    %20 = vector.load %arg3[%c1, %c0_13, %c0_14] : memref<4x64x8xf32, #tpu.memory_space<vmem>>, vector<1x64x8xf32>
    %21 = vector.shape_cast %20 : vector<1x64x8xf32> to vector<64x8xf32>
    %cst_15 = arith.constant dense<0.000000e+00> : vector<128x8xf32>
    %22 = tpu.matmul %13, %21, %cst_15 {dimension_numbers = #tpu.dot_dimension_numbers<[1], [0], [0], [1], [0, 0, 1, 1], [], []>} : vector<128x64xf32>, vector<64x8xf32>, vector<128x8xf32> -> vector<128x8xf32>
    %c1_16 = arith.constant 1 : index
    %c0_17 = arith.constant 0 : index
    %c0_18 = arith.constant 0 : index
    %23 = vector.load %arg4[%c1_16, %c0_17, %c0_18] : memref<4x128x8xf32, #tpu.memory_space<vmem>>, vector<1x128x8xf32>
    %24 = vector.shape_cast %23 : vector<1x128x8xf32> to vector<128x8xf32>
    %25 = vector.shape_cast %22 : vector<128x8xf32> to vector<1x128x8xf32>
    tpu.vector_store %arg4[%c1_16, %c0_17, %c0_18], %25 {strides = array<i32>} : memref<4x128x8xf32, #tpu.memory_space<vmem>>, vector<1x128x8xf32>,
    %c2 = arith.constant 2 : index
    %c0_19 = arith.constant 0 : index
    %c0_20 = arith.constant 0 : index
    %26 = vector.load %arg3[%c2, %c0_19, %c0_20] : memref<4x64x8xf32, #tpu.memory_space<vmem>>, vector<1x64x8xf32>
    %27 = vector.shape_cast %26 : vector<1x64x8xf32> to vector<64x8xf32>
    %cst_21 = arith.constant dense<0.000000e+00> : vector<128x8xf32>
    %28 = tpu.matmul %13, %27, %cst_21 {dimension_numbers = #tpu.dot_dimension_numbers<[1], [0], [0], [1], [0, 0, 1, 1], [], []>} : vector<128x64xf32>, vector<64x8xf32>, vector<128x8xf32> -> vector<128x8xf32>
    %c2_22 = arith.constant 2 : index
    %c0_23 = arith.constant 0 : index
    %c0_24 = arith.constant 0 : index
    %29 = vector.load %arg4[%c2_22, %c0_23, %c0_24] : memref<4x128x8xf32, #tpu.memory_space<vmem>>, vector<1x128x8xf32>
    %30 = vector.shape_cast %29 : vector<1x128x8xf32> to vector<128x8xf32>
    %31 = vector.shape_cast %28 : vector<128x8xf32> to vector<1x128x8xf32>
    tpu.vector_store %arg4[%c2_22, %c0_23, %c0_24], %31 {strides = array<i32>} : memref<4x128x8xf32, #tpu.memory_space<vmem>>, vector<1x128x8xf32>,
    %c3 = arith.constant 3 : index
    %c0_25 = arith.constant 0 : index
    %c0_26 = arith.constant 0 : index
    %32 = vector.load %arg3[%c3, %c0_25, %c0_26] : memref<4x64x8xf32, #tpu.memory_space<vmem>>, vector<1x64x8xf32>
    %33 = vector.shape_cast %32 : vector<1x64x8xf32> to vector<64x8xf32>
    %cst_27 = arith.constant dense<0.000000e+00> : vector<128x8xf32>
    %34 = tpu.matmul %13, %33, %cst_27 {dimension_numbers = #tpu.dot_dimension_numbers<[1], [0], [0], [1], [0, 0, 1, 1], [], []>} : vector<128x64xf32>, vector<64x8xf32>, vector<128x8xf32> -> vector<128x8xf32>
    %c3_28 = arith.constant 3 : index
    %c0_29 = arith.constant 0 : index
    %c0_30 = arith.constant 0 : index
    %35 = vector.load %arg4[%c3_28, %c0_29, %c0_30] : memref<4x128x8xf32, #tpu.memory_space<vmem>>, vector<1x128x8xf32>
    %36 = vector.shape_cast %35 : vector<1x128x8xf32> to vector<128x8xf32>
    %37 = vector.shape_cast %34 : vector<128x8xf32> to vector<1x128x8xf32>
    tpu.vector_store %arg4[%c3_28, %c0_29, %c0_30], %37 {strides = array<i32>} : memref<4x128x8xf32, #tpu.memory_space<vmem>>, vector<1x128x8xf32>,
    return
  }
  func.func @transform_0(%arg0: i32) -> (i32, i32) {
    %c0_i32 = arith.constant 0 : i32
    %c0_i32_0 = arith.constant 0 : i32
    return %arg0, %c0_i32 : i32, i32
  }
  func.func @transform_1(%arg0: i32) -> (i32, i32) {
    %c0_i32 = arith.constant 0 : i32
    %c0_i32_0 = arith.constant 0 : i32
    return %arg0, %c0_i32 : i32, i32
  }
  func.func @transform_2(%arg0: i32) -> (i32, i32, i32) {
    %c0_i32 = arith.constant 0 : i32
    %c0_i32_0 = arith.constant 0 : i32
    %c0_i32_1 = arith.constant 0 : i32
    %c0_i32_2 = arith.constant 0 : i32
    return %c0_i32, %c0_i32_0, %c0_i32_1 : i32, i32, i32
  }
  func.func @transform_3(%arg0: i32) -> (i32, i32, i32) {
    %c0_i32 = arith.constant 0 : i32
    %c0_i32_0 = arith.constant 0 : i32
    %c0_i32_1 = arith.constant 0 : i32
    return %c0_i32, %arg0, %c0_i32_0 : i32, i32, i32
  }
}

</mosaic_0001>

<llo_original>
// kernel: tpu_custom_call.1
$region0: #{tpu_custom_call.1}
  #allocation0 [shape = 'u32[]', space=smem, size = 0x4, offset = 0x4, fixed_abs, tag = 'smem constant byte address 0x4 - core index']
  #allocation1 [shape = 'u32[72,128]{1,0:T(1,128)}', space=vmem, size = 0x9000, scoped, tag = 'internal scratch']
  %s0 = inlined_call_operand.vmem [shape: s32[128,1], index: 0, kind: input, shape index: {}]
  %s1 = inlined_call_operand.vmem [shape: s32[128,1], index: 1, kind: input, shape index: {}]
  %s2 = inlined_call_operand.vmem [shape: f32[4,64,8], index: 2, kind: input, shape index: {}]
  %s3 = inlined_call_operand.vmem [shape: f32[4,128,8], index: 3, kind: output, shape index: {}]
  %s4 = sld [smem:[#allocation0]]
  $region22: #{tpu_custom_call.1} parent=0
    _
  %s6 = ssub.s32 1, %s4
  %s7 = scalar_select 0, %s6, %s4
  // Predicated region
  $region2: #{tpu_custom_call.1} parent=0 // pred_check
    _
  $region3: #{tpu_custom_call.1} parent=0 // pred_check_branch
    %9 = sbr.rel (0) target = $region5
  $region4: #{tpu_custom_call.1} parent=0 // pred_region
    _
  $region5: #{tpu_custom_call.1} parent=0 // pred_fallthru
    _
  // Predicated region
  $region6: #{tpu_custom_call.1} parent=0 // pred_check
    _
  $region7: #{tpu_custom_call.1} parent=0 // pred_check_branch
    %11 = sbr.rel (0) target = $region9
  $region8: #{tpu_custom_call.1} parent=0 // pred_region
    _
  $region9: #{tpu_custom_call.1} parent=0 // pred_fallthru
    _
  // Predicated region
  $region10: #{tpu_custom_call.1} parent=0 // pred_check
    _
  $region11: #{tpu_custom_call.1} parent=0 // pred_check_branch
    %13 = sbr.rel (0) target = $region13
  $region12: #{tpu_custom_call.1} parent=0 // pred_region
    _
  $region13: #{tpu_custom_call.1} parent=0 // pred_fallthru
    _
  %v14 = vlaneseq
  %v15 = vand.u32 %v14, 127
  %v16 = vld [vmem:[%s0] sm:$0xff]
  %v17 = vld [vmem:[%s0 + $0x8] sm:$0xff]
  %v18 = vld [vmem:[%s0 + $0x10] sm:$0xff]
  %v19 = vld [vmem:[%s0 + $0x18] sm:$0xff]
  %v20 = vld [vmem:[%s0 + $0x20] sm:$0xff]
  %v21 = vld [vmem:[%s0 + $0x28] sm:$0xff]
  %v22 = vld [vmem:[%s0 + $0x30] sm:$0xff]
  %v23 = vld [vmem:[%s0 + $0x38] sm:$0xff]
  %v24 = vld [vmem:[%s0 + $0x40] sm:$0xff]
  %v25 = vld [vmem:[%s0 + $0x48] sm:$0xff]
  %v26 = vld [vmem:[%s0 + $0x50] sm:$0xff]
  %v27 = vld [vmem:[%s0 + $0x58] sm:$0xff]
  %v28 = vld [vmem:[%s0 + $0x60] sm:$0xff]
  %v29 = vld [vmem:[%s0 + $0x68] sm:$0xff]
  %v30 = vld [vmem:[%s0 + $0x70] sm:$0xff]
  %v31 = vld [vmem:[%s0 + $0x78] sm:$0xff]
  %32 = vset.pattern.permute.xlu0 0
  %33 = vperm.xlu0 %32, %v16
  %v34 = vpop.permute.xlu0 %33
  %35 = vset.pattern.permute.xlu0 0
  %36 = vperm.xlu0 %35, %v17
  %v37 = vpop.permute.xlu0 %36
  %38 = vset.pattern.permute.xlu0 0
  %39 = vperm.xlu0 %38, %v18
  %v40 = vpop.permute.xlu0 %39
  %41 = vset.pattern.permute.xlu0 0
  %42 = vperm.xlu0 %41, %v19
  %v43 = vpop.permute.xlu0 %42
  %44 = vset.pattern.permute.xlu0 0
  %45 = vperm.xlu0 %44, %v20
  %v46 = vpop.permute.xlu0 %45
  %47 = vset.pattern.permute.xlu0 0
  %48 = vperm.xlu0 %47, %v21
  %v49 = vpop.permute.xlu0 %48
  %50 = vset.pattern.permute.xlu0 0
  %51 = vperm.xlu0 %50, %v22
  %v52 = vpop.permute.xlu0 %51
  %53 = vset.pattern.permute.xlu0 0
  %54 = vperm.xlu0 %53, %v23
  %v55 = vpop.permute.xlu0 %54
  %56 = vset.pattern.permute.xlu0 0
  %57 = vperm.xlu0 %56, %v24
  %v58 = vpop.permute.xlu0 %57
  %59 = vset.pattern.permute.xlu0 0
  %60 = vperm.xlu0 %59, %v25
  %v61 = vpop.permute.xlu0 %60
  %62 = vset.pattern.permute.xlu0 0
  %63 = vperm.xlu0 %62, %v26
  %v64 = vpop.permute.xlu0 %63
  %65 = vset.pattern.permute.xlu0 0
  %66 = vperm.xlu0 %65, %v27
  %v67 = vpop.permute.xlu0 %66
  %68 = vset.pattern.permute.xlu0 0
  %69 = vperm.xlu0 %68, %v28
  %v70 = vpop.permute.xlu0 %69
  %71 = vset.pattern.permute.xlu0 0
  %72 = vperm.xlu0 %71, %v29
  %v73 = vpop.permute.xlu0 %72
  %74 = vset.pattern.permute.xlu0 0
  %75 = vperm.xlu0 %74, %v30
  %v76 = vpop.permute.xlu0 %75
  %77 = vset.pattern.permute.xlu0 0
  %78 = vperm.xlu0 %77, %v31
  %v79 = vpop.permute.xlu0 %78
  %vm80 = vcmp.eq.s32.totalorder %v15, %v34
  %vm81 = vcmp.eq.s32.totalorder %v15, %v37
  %vm82 = vcmp.eq.s32.totalorder %v15, %v40
  %vm83 = vcmp.eq.s32.totalorder %v15, %v43
  %vm84 = vcmp.eq.s32.totalorder %v15, %v46
  %vm85 = vcmp.eq.s32.totalorder %v15, %v49
  %vm86 = vcmp.eq.s32.totalorder %v15, %v52
  %vm87 = vcmp.eq.s32.totalorder %v15, %v55
  %vm88 = vcmp.eq.s32.totalorder %v15, %v58
  %vm89 = vcmp.eq.s32.totalorder %v15, %v61
  %vm90 = vcmp.eq.s32.totalorder %v15, %v64
  %vm91 = vcmp.eq.s32.totalorder %v15, %v67
  %vm92 = vcmp.eq.s32.totalorder %v15, %v70
  %vm93 = vcmp.eq.s32.totalorder %v15, %v73
  %vm94 = vcmp.eq.s32.totalorder %v15, %v76
  %vm95 = vcmp.eq.s32.totalorder %v15, %v79
  %v96 = vsel %vm80, 1.0, 0.0
  %v97 = vsel %vm81, 1.0, 0.0
  %v98 = vsel %vm82, 1.0, 0.0
  %v99 = vsel %vm83, 1.0, 0.0
  %v100 = vsel %vm84, 1.0, 0.0
  %v101 = vsel %vm85, 1.0, 0.0
  %v102 = vsel %vm86, 1.0, 0.0
  %v103 = vsel %vm87, 1.0, 0.0
  %v104 = vsel %vm88, 1.0, 0.0
  %v105 = vsel %vm89, 1.0, 0.0
  %v106 = vsel %vm90, 1.0, 0.0
  %v107 = vsel %vm91, 1.0, 0.0
  %v108 = vsel %vm92, 1.0, 0.0
  %v109 = vsel %vm93, 1.0, 0.0
  %v110 = vsel %vm94, 1.0, 0.0
  %v111 = vsel %vm95, 1.0, 0.0
  %v112 = vld [vmem:[%s1] sm:$0xff]
  %v113 = vld [vmem:[%s1 + $0x8] sm:$0xff]
  %v114 = vld [vmem:[%s1 + $0x10] sm:$0xff]
  %v115 = vld [vmem:[%s1 + $0x18] sm:$0xff]
  %v116 = vld [vmem:[%s1 + $0x20] sm:$0xff]
  %v117 = vld [vmem:[%s1 + $0x28] sm:$0xff]
  %v118 = vld [vmem:[%s1 + $0x30] sm:$0xff]
  %v119 = vld [vmem:[%s1 + $0x38] sm:$0xff]
  %v120 = vld [vmem:[%s1 + $0x40] sm:$0xff]
  %v121 = vld [vmem:[%s1 + $0x48] sm:$0xff]
  %v122 = vld [vmem:[%s1 + $0x50] sm:$0xff]
  %v123 = vld [vmem:[%s1 + $0x58] sm:$0xff]
  %v124 = vld [vmem:[%s1 + $0x60] sm:$0xff]
  %v125 = vld [vmem:[%s1 + $0x68] sm:$0xff]
  %v126 = vld [vmem:[%s1 + $0x70] sm:$0xff]
  %v127 = vld [vmem:[%s1 + $0x78] sm:$0xff]
  %128 = vset.pattern.permute.xlu0 0
  %129 = vperm.xlu0 %128, %v112
  %v130 = vpop.permute.xlu0 %129
  %131 = vset.pattern.permute.xlu0 0
  %132 = vperm.xlu0 %131, %v113
  %v133 = vpop.permute.xlu0 %132
  %134 = vset.pattern.permute.xlu0 0
  %135 = vperm.xlu0 %134, %v114
  %v136 = vpop.permute.xlu0 %135
  %137 = vset.pattern.permute.xlu0 0
  %138 = vperm.xlu0 %137, %v115
  %v139 = vpop.permute.xlu0 %138
  %140 = vset.pattern.permute.xlu0 0
  %141 = vperm.xlu0 %140, %v116
  %v142 = vpop.permute.xlu0 %141
  %143 = vset.pattern.permute.xlu0 0
  %144 = vperm.xlu0 %143, %v117
  %v145 = vpop.permute.xlu0 %144
  %146 = vset.pattern.permute.xlu0 0
  %147 = vperm.xlu0 %146, %v118
  %v148 = vpop.permute.xlu0 %147
  %149 = vset.pattern.permute.xlu0 0
  %150 = vperm.xlu0 %149, %v119
  %v151 = vpop.permute.xlu0 %150
  %152 = vset.pattern.permute.xlu0 0
  %153 = vperm.xlu0 %152, %v120
  %v154 = vpop.permute.xlu0 %153
  %155 = vset.pattern.permute.xlu0 0
  %156 = vperm.xlu0 %155, %v121
  %v157 = vpop.permute.xlu0 %156
  %158 = vset.pattern.permute.xlu0 0
  %159 = vperm.xlu0 %158, %v122
  %v160 = vpop.permute.xlu0 %159
  %161 = vset.pattern.permute.xlu0 0
  %162 = vperm.xlu0 %161, %v123
  %v163 = vpop.permute.xlu0 %162
  %164 = vset.pattern.permute.xlu0 0
  %165 = vperm.xlu0 %164, %v124
  %v166 = vpop.permute.xlu0 %165
  %167 = vset.pattern.permute.xlu0 0
  %168 = vperm.xlu0 %167, %v125
  %v169 = vpop.permute.xlu0 %168
  %170 = vset.pattern.permute.xlu0 0
  %171 = vperm.xlu0 %170, %v126
  %v172 = vpop.permute.xlu0 %171
  %173 = vset.pattern.permute.xlu0 0
  %174 = vperm.xlu0 %173, %v127
  %v175 = vpop.permute.xlu0 %174
  %vm176 = vcmp.eq.s32.totalorder %v15, %v130
  %vm177 = vcmp.eq.s32.totalorder %v15, %v133
  %vm178 = vcmp.eq.s32.totalorder %v15, %v136
  %vm179 = vcmp.eq.s32.totalorder %v15, %v139
  %vm180 = vcmp.eq.s32.totalorder %v15, %v142
  %vm181 = vcmp.eq.s32.totalorder %v15, %v145
  %vm182 = vcmp.eq.s32.totalorder %v15, %v148
  %vm183 = vcmp.eq.s32.totalorder %v15, %v151
  %vm184 = vcmp.eq.s32.totalorder %v15, %v154
  %vm185 = vcmp.eq.s32.totalorder %v15, %v157
  %vm186 = vcmp.eq.s32.totalorder %v15, %v160
  %vm187 = vcmp.eq.s32.totalorder %v15, %v163
  %vm188 = vcmp.eq.s32.totalorder %v15, %v166
  %vm189 = vcmp.eq.s32.totalorder %v15, %v169
  %vm190 = vcmp.eq.s32.totalorder %v15, %v172
  %vm191 = vcmp.eq.s32.totalorder %v15, %v175
  %v192 = vsel %vm176, 1.0, 0.0
  %v193 = vsel %vm177, 1.0, 0.0
  %v194 = vsel %vm178, 1.0, 0.0
  %v195 = vsel %vm179, 1.0, 0.0
  %v196 = vsel %vm180, 1.0, 0.0
  %v197 = vsel %vm181, 1.0, 0.0
  %v198 = vsel %vm182, 1.0, 0.0
  %v199 = vsel %vm183, 1.0, 0.0
  %v200 = vsel %vm184, 1.0, 0.0
  %v201 = vsel %vm185, 1.0, 0.0
  %v202 = vsel %vm186, 1.0, 0.0
  %v203 = vsel %vm187, 1.0, 0.0
  %v204 = vsel %vm188, 1.0, 0.0
  %v205 = vsel %vm189, 1.0, 0.0
  %v206 = vsel %vm190, 1.0, 0.0
  %v207 = vsel %vm191, 1.0, 0.0
  %v208 = vsub.f32 %v96, %v192
  %v209 = vsub.f32 %v97, %v193
  %v210 = vsub.f32 %v98, %v194
  %v211 = vsub.f32 %v99, %v195
  %v212 = vsub.f32 %v100, %v196
  %v213 = vsub.f32 %v101, %v197
  %v214 = vsub.f32 %v102, %v198
  %v215 = vsub.f32 %v103, %v199
  %v216 = vsub.f32 %v104, %v200
  %v217 = vsub.f32 %v105, %v201
  %v218 = vsub.f32 %v106, %v202
  %v219 = vsub.f32 %v107, %v203
  %v220 = vsub.f32 %v108, %v204
  %v221 = vsub.f32 %v109, %v205
  %v222 = vsub.f32 %v110, %v206
  %v223 = vsub.f32 %v111, %v207
  %v224 = vld [vmem:[%s2] sm:$0xff]
  %v225 = vld [vmem:[%s2 + $0x8] sm:$0xff]
  %v226 = vld [vmem:[%s2 + $0x10] sm:$0xff]
  %v227 = vld [vmem:[%s2 + $0x18] sm:$0xff]
  %v228 = vld [vmem:[%s2 + $0x20] sm:$0xff]
  %v229 = vld [vmem:[%s2 + $0x28] sm:$0xff]
  %v230 = vld [vmem:[%s2 + $0x30] sm:$0xff]
  %v231 = vld [vmem:[%s2 + $0x38] sm:$0xff]
  %vm232 = vcmask 523264
  %v234 = vsel %vm232, %v208, 0
  %v237 = vsel %vm232, %v209, 0
  %v240 = vsel %vm232, %v210, 0
  %v243 = vsel %vm232, %v211, 0
  %v246 = vsel %vm232, %v212, 0
  %v249 = vsel %vm232, %v213, 0
  %v252 = vsel %vm232, %v214, 0
  %v255 = vsel %vm232, %v215, 0
  %v258 = vsel %vm232, %v216, 0
  %v261 = vsel %vm232, %v217, 0
  %v264 = vsel %vm232, %v218, 0
  %v267 = vsel %vm232, %v219, 0
  %v270 = vsel %vm232, %v220, 0
  %v273 = vsel %vm232, %v221, 0
  %v276 = vsel %vm232, %v222, 0
  %v279 = vsel %vm232, %v223, 0
  %281 = vmatpush.msra.mxu0 0.0
  %282 = vmatpush.msra.mxu0 0.0
  %283 = vmatpush.msra.mxu0 0.0
  %284 = vmatpush.msra.mxu0 0.0
  %285 = vmatpush.msra.mxu0 0.0
  %286 = vmatpush.msra.mxu0 0.0
  %287 = vmatpush.msra.mxu0 0.0
  %288 = vmatpush.msra.mxu0 0.0
  %289 = vmatpush.msra.mxu0 %v231
  %290 = vmatpush.msra.mxu0 %v230
  %291 = vmatpush.msra.mxu0 %v229
  %292 = vmatpush.msra.mxu0 %v228
  %293 = vmatpush.msra.mxu0 %v227
  %294 = vmatpush.msra.mxu0 %v226
  %295 = vmatpush.msra.mxu0 %v225
  %296 = vmatpush.msra.mxu0 %v224
  %297 = vmatmul.f32.gmra.mxu0 %v234
  %v298 = vpop.f32.mrf.mxu0
  %v299 = vadd.f32 0.0, %v298
  %300 = vmatmul.f32.gmra.mxu0 %v237
  %v301 = vpop.f32.mrf.mxu0
  %v302 = vadd.f32 0.0, %v301
  %303 = vmatmul.f32.gmra.mxu0 %v240
  %v304 = vpop.f32.mrf.mxu0
  %v305 = vadd.f32 0.0, %v304
  %306 = vmatmul.f32.gmra.mxu0 %v243
  %v307 = vpop.f32.mrf.mxu0
  %v308 = vadd.f32 0.0, %v307
  %309 = vmatmul.f32.gmra.mxu0 %v246
  %v310 = vpop.f32.mrf.mxu0
  %v311 = vadd.f32 0.0, %v310
  %312 = vmatmul.f32.gmra.mxu0 %v249
  %v313 = vpop.f32.mrf.mxu0
  %v314 = vadd.f32 0.0, %v313
  %315 = vmatmul.f32.gmra.mxu0 %v252
  %v316 = vpop.f32.mrf.mxu0
  %v317 = vadd.f32 0.0, %v316
  %318 = vmatmul.f32.gmra.mxu0 %v255
  %v319 = vpop.f32.mrf.mxu0
  %v320 = vadd.f32 0.0, %v319
  %321 = vmatmul.f32.gmra.mxu0 %v258
  %v322 = vpop.f32.mrf.mxu0
  %v323 = vadd.f32 0.0, %v322
  %324 = vmatmul.f32.gmra.mxu0 %v261
  %v325 = vpop.f32.mrf.mxu0
  %v326 = vadd.f32 0.0, %v325
  %327 = vmatmul.f32.gmra.mxu0 %v264
  %v328 = vpop.f32.mrf.mxu0
  %v329 = vadd.f32 0.0, %v328
  %330 = vmatmul.f32.gmra.mxu0 %v267
  %v331 = vpop.f32.mrf.mxu0
  %v332 = vadd.f32 0.0, %v331
  %333 = vmatmul.f32.gmra.mxu0 %v270
  %v334 = vpop.f32.mrf.mxu0
  %v335 = vadd.f32 0.0, %v334
  %336 = vmatmul.f32.gmra.mxu0 %v273
  %v337 = vpop.f32.mrf.mxu0
  %v338 = vadd.f32 0.0, %v337
  %339 = vmatmul.f32.gmra.mxu0 %v276
  %v340 = vpop.f32.mrf.mxu0
  %v341 = vadd.f32 0.0, %v340
  %342 = vmatmul.f32.gmra.mxu0 %v279
  %v343 = vpop.f32.mrf.mxu0
  %v344 = vadd.f32 0.0, %v343
  %345 = vdwg.mxu0
  %vm346 = vcmask 64512
  %347 = vst.msk [vmem:[%s3] sm:$0xff] %vm346, %v299
  %348 = vst.msk [vmem:[%s3 + $0x8] sm:$0xff] %vm346, %v302
  %349 = vst.msk [vmem:[%s3 + $0x10] sm:$0xff] %vm346, %v305
  %350 = vst.msk [vmem:[%s3 + $0x18] sm:$0xff] %vm346, %v308
  %351 = vst.msk [vmem:[%s3 + $0x20] sm:$0xff] %vm346, %v311
  %352 = vst.msk [vmem:[%s3 + $0x28] sm:$0xff] %vm346, %v314
  %353 = vst.msk [vmem:[%s3 + $0x30] sm:$0xff] %vm346, %v317
  %354 = vst.msk [vmem:[%s3 + $0x38] sm:$0xff] %vm346, %v320
  %355 = vst.msk [vmem:[%s3 + $0x40] sm:$0xff] %vm346, %v323
  %356 = vst.msk [vmem:[%s3 + $0x48] sm:$0xff] %vm346, %v326
  %357 = vst.msk [vmem:[%s3 + $0x50] sm:$0xff] %vm346, %v329
  %358 = vst.msk [vmem:[%s3 + $0x58] sm:$0xff] %vm346, %v332
  %359 = vst.msk [vmem:[%s3 + $0x60] sm:$0xff] %vm346, %v335
  %360 = vst.msk [vmem:[%s3 + $0x68] sm:$0xff] %vm346, %v338
  %361 = vst.msk [vmem:[%s3 + $0x70] sm:$0xff] %vm346, %v341
  %362 = vst.msk [vmem:[%s3 + $0x78] sm:$0xff] %vm346, %v344
  %s363 = scalar_lea.vmem %s2, 64
  %v364 = vld [vmem:[%s363] sm:$0xff]
  %v365 = vld [vmem:[%s363 + $0x8] sm:$0xff]
  %v366 = vld [vmem:[%s363 + $0x10] sm:$0xff]
  %v367 = vld [vmem:[%s363 + $0x18] sm:$0xff]
  %v368 = vld [vmem:[%s363 + $0x20] sm:$0xff]
  %v369 = vld [vmem:[%s363 + $0x28] sm:$0xff]
  %v370 = vld [vmem:[%s363 + $0x30] sm:$0xff]
  %v371 = vld [vmem:[%s363 + $0x38] sm:$0xff]
  %372 = vmatpush.msra.mxu0 0.0
  %373 = vmatpush.msra.mxu0 0.0
  %374 = vmatpush.msra.mxu0 0.0
  %375 = vmatpush.msra.mxu0 0.0
  %376 = vmatpush.msra.mxu0 0.0
  %377 = vmatpush.msra.mxu0 0.0
  %378 = vmatpush.msra.mxu0 0.0
  %379 = vmatpush.msra.mxu0 0.0
  %380 = vmatpush.msra.mxu0 %v371
  %381 = vmatpush.msra.mxu0 %v370
  %382 = vmatpush.msra.mxu0 %v369
  %383 = vmatpush.msra.mxu0 %v368
  %384 = vmatpush.msra.mxu0 %v367
  %385 = vmatpush.msra.mxu0 %v366
  %386 = vmatpush.msra.mxu0 %v365
  %387 = vmatpush.msra.mxu0 %v364
  %388 = vmatmul.f32.gmra.mxu0 %v234
  %v389 = vpop.f32.mrf.mxu0
  %v390 = vadd.f32 0.0, %v389
  %391 = vmatmul.f32.gmra.mxu0 %v237
  %v392 = vpop.f32.mrf.mxu0
  %v393 = vadd.f32 0.0, %v392
  %394 = vmatmul.f32.gmra.mxu0 %v240
  %v395 = vpop.f32.mrf.mxu0
  %v396 = vadd.f32 0.0, %v395
  %397 = vmatmul.f32.gmra.mxu0 %v243
  %v398 = vpop.f32.mrf.mxu0
  %v399 = vadd.f32 0.0, %v398
  %400 = vmatmul.f32.gmra.mxu0 %v246
  %v401 = vpop.f32.mrf.mxu0
  %v402 = vadd.f32 0.0, %v401
  %403 = vmatmul.f32.gmra.mxu0 %v249
  %v404 = vpop.f32.mrf.mxu0
  %v405 = vadd.f32 0.0, %v404
  %406 = vmatmul.f32.gmra.mxu0 %v252
  %v407 = vpop.f32.mrf.mxu0
  %v408 = vadd.f32 0.0, %v407
  %409 = vmatmul.f32.gmra.mxu0 %v255
  %v410 = vpop.f32.mrf.mxu0
  %v411 = vadd.f32 0.0, %v410
  %412 = vmatmul.f32.gmra.mxu0 %v258
  %v413 = vpop.f32.mrf.mxu0
  %v414 = vadd.f32 0.0, %v413
  %415 = vmatmul.f32.gmra.mxu0 %v261
  %v416 = vpop.f32.mrf.mxu0
  %v417 = vadd.f32 0.0, %v416
  %418 = vmatmul.f32.gmra.mxu0 %v264
  %v419 = vpop.f32.mrf.mxu0
  %v420 = vadd.f32 0.0, %v419
  %421 = vmatmul.f32.gmra.mxu0 %v267
  %v422 = vpop.f32.mrf.mxu0
  %v423 = vadd.f32 0.0, %v422
  %424 = vmatmul.f32.gmra.mxu0 %v270
  %v425 = vpop.f32.mrf.mxu0
  %v426 = vadd.f32 0.0, %v425
  %427 = vmatmul.f32.gmra.mxu0 %v273
  %v428 = vpop.f32.mrf.mxu0
  %v429 = vadd.f32 0.0, %v428
  %430 = vmatmul.f32.gmra.mxu0 %v276
  %v431 = vpop.f32.mrf.mxu0
  %v432 = vadd.f32 0.0, %v431
  %433 = vmatmul.f32.gmra.mxu0 %v279
  %v434 = vpop.f32.mrf.mxu0
  %v435 = vadd.f32 0.0, %v434
  %436 = vdwg.mxu0
  %s437 = scalar_lea.vmem %s3, 128
  %438 = vst.msk [vmem:[%s437] sm:$0xff] %vm346, %v390
  %439 = vst.msk [vmem:[%s437 + $0x8] sm:$0xff] %vm346, %v393
  %440 = vst.msk [vmem:[%s437 + $0x10] sm:$0xff] %vm346, %v396
  %441 = vst.msk [vmem:[%s437 + $0x18] sm:$0xff] %vm346, %v399
  %442 = vst.msk [vmem:[%s437 + $0x20] sm:$0xff] %vm346, %v402
  %443 = vst.msk [vmem:[%s437 + $0x28] sm:$0xff] %vm346, %v405
  %444 = vst.msk [vmem:[%s437 + $0x30] sm:$0xff] %vm346, %v408
  %445 = vst.msk [vmem:[%s437 + $0x38] sm:$0xff] %vm346, %v411
  %446 = vst.msk [vmem:[%s437 + $0x40] sm:$0xff] %vm346, %v414
  %447 = vst.msk [vmem:[%s437 + $0x48] sm:$0xff] %vm346, %v417
  %448 = vst.msk [vmem:[%s437 + $0x50] sm:$0xff] %vm346, %v420
  %449 = vst.msk [vmem:[%s437 + $0x58] sm:$0xff] %vm346, %v423
  %450 = vst.msk [vmem:[%s437 + $0x60] sm:$0xff] %vm346, %v426
  %451 = vst.msk [vmem:[%s437 + $0x68] sm:$0xff] %vm346, %v429
  %452 = vst.msk [vmem:[%s437 + $0x70] sm:$0xff] %vm346, %v432
  %453 = vst.msk [vmem:[%s437 + $0x78] sm:$0xff] %vm346, %v435
  %s454 = scalar_lea.vmem %s2, 128
  %v455 = vld [vmem:[%s454] sm:$0xff]
  %v456 = vld [vmem:[%s454 + $0x8] sm:$0xff]
  %v457 = vld [vmem:[%s454 + $0x10] sm:$0xff]
  %v458 = vld [vmem:[%s454 + $0x18] sm:$0xff]
  %v459 = vld [vmem:[%s454 + $0x20] sm:$0xff]
  %v460 = vld [vmem:[%s454 + $0x28] sm:$0xff]
  %v461 = vld [vmem:[%s454 + $0x30] sm:$0xff]
  %v462 = vld [vmem:[%s454 + $0x38] sm:$0xff]
  %463 = vmatpush.msra.mxu0 0.0
  %464 = vmatpush.msra.mxu0 0.0
  %465 = vmatpush.msra.mxu0 0.0
  %466 = vmatpush.msra.mxu0 0.0
  %467 = vmatpush.msra.mxu0 0.0
  %468 = vmatpush.msra.mxu0 0.0
  %469 = vmatpush.msra.mxu0 0.0
  %470 = vmatpush.msra.mxu0 0.0
  %471 = vmatpush.msra.mxu0 %v462
  %472 = vmatpush.msra.mxu0 %v461
  %473 = vmatpush.msra.mxu0 %v460
  %474 = vmatpush.msra.mxu0 %v459
  %475 = vmatpush.msra.mxu0 %v458
  %476 = vmatpush.msra.mxu0 %v457
  %477 = vmatpush.msra.mxu0 %v456
  %478 = vmatpush.msra.mxu0 %v455
  %479 = vmatmul.f32.gmra.mxu0 %v234
  %v480 = vpop.f32.mrf.mxu0
  %v481 = vadd.f32 0.0, %v480
  %482 = vmatmul.f32.gmra.mxu0 %v237
  %v483 = vpop.f32.mrf.mxu0
  %v484 = vadd.f32 0.0, %v483
  %485 = vmatmul.f32.gmra.mxu0 %v240
  %v486 = vpop.f32.mrf.mxu0
  %v487 = vadd.f32 0.0, %v486
  %488 = vmatmul.f32.gmra.mxu0 %v243
  %v489 = vpop.f32.mrf.mxu0
  %v490 = vadd.f32 0.0, %v489
  %491 = vmatmul.f32.gmra.mxu0 %v246
  %v492 = vpop.f32.mrf.mxu0
  %v493 = vadd.f32 0.0, %v492
  %494 = vmatmul.f32.gmra.mxu0 %v249
  %v495 = vpop.f32.mrf.mxu0
  %v496 = vadd.f32 0.0, %v495
  %497 = vmatmul.f32.gmra.mxu0 %v252
  %v498 = vpop.f32.mrf.mxu0
  %v499 = vadd.f32 0.0, %v498
  %500 = vmatmul.f32.gmra.mxu0 %v255
  %v501 = vpop.f32.mrf.mxu0
  %v502 = vadd.f32 0.0, %v501
  %503 = vmatmul.f32.gmra.mxu0 %v258
  %v504 = vpop.f32.mrf.mxu0
  %v505 = vadd.f32 0.0, %v504
  %506 = vmatmul.f32.gmra.mxu0 %v261
  %v507 = vpop.f32.mrf.mxu0
  %v508 = vadd.f32 0.0, %v507
  %509 = vmatmul.f32.gmra.mxu0 %v264
  %v510 = vpop.f32.mrf.mxu0
  %v511 = vadd.f32 0.0, %v510
  %512 = vmatmul.f32.gmra.mxu0 %v267
  %v513 = vpop.f32.mrf.mxu0
  %v514 = vadd.f32 0.0, %v513
  %515 = vmatmul.f32.gmra.mxu0 %v270
  %v516 = vpop.f32.mrf.mxu0
  %v517 = vadd.f32 0.0, %v516
  %518 = vmatmul.f32.gmra.mxu0 %v273
  %v519 = vpop.f32.mrf.mxu0
  %v520 = vadd.f32 0.0, %v519
  %521 = vmatmul.f32.gmra.mxu0 %v276
  %v522 = vpop.f32.mrf.mxu0
  %v523 = vadd.f32 0.0, %v522
  %524 = vmatmul.f32.gmra.mxu0 %v279
  %v525 = vpop.f32.mrf.mxu0
  %v526 = vadd.f32 0.0, %v525
  %527 = vdwg.mxu0
  %s528 = scalar_lea.vmem %s3, 256
  %529 = vst.msk [vmem:[%s528] sm:$0xff] %vm346, %v481
  %530 = vst.msk [vmem:[%s528 + $0x8] sm:$0xff] %vm346, %v484
  %531 = vst.msk [vmem:[%s528 + $0x10] sm:$0xff] %vm346, %v487
  %532 = vst.msk [vmem:[%s528 + $0x18] sm:$0xff] %vm346, %v490
  %533 = vst.msk [vmem:[%s528 + $0x20] sm:$0xff] %vm346, %v493
  %534 = vst.msk [vmem:[%s528 + $0x28] sm:$0xff] %vm346, %v496
  %535 = vst.msk [vmem:[%s528 + $0x30] sm:$0xff] %vm346, %v499
  %536 = vst.msk [vmem:[%s528 + $0x38] sm:$0xff] %vm346, %v502
  %537 = vst.msk [vmem:[%s528 + $0x40] sm:$0xff] %vm346, %v505
  %538 = vst.msk [vmem:[%s528 + $0x48] sm:$0xff] %vm346, %v508
  %539 = vst.msk [vmem:[%s528 + $0x50] sm:$0xff] %vm346, %v511
  %540 = vst.msk [vmem:[%s528 + $0x58] sm:$0xff] %vm346, %v514
  %541 = vst.msk [vmem:[%s528 + $0x60] sm:$0xff] %vm346, %v517
  %542 = vst.msk [vmem:[%s528 + $0x68] sm:$0xff] %vm346, %v520
  %543 = vst.msk [vmem:[%s528 + $0x70] sm:$0xff] %vm346, %v523
  %544 = vst.msk [vmem:[%s528 + $0x78] sm:$0xff] %vm346, %v526
  %s545 = scalar_lea.vmem %s2, 192
  %v546 = vld [vmem:[%s545] sm:$0xff]
  %v547 = vld [vmem:[%s545 + $0x8] sm:$0xff]
  %v548 = vld [vmem:[%s545 + $0x10] sm:$0xff]
  %v549 = vld [vmem:[%s545 + $0x18] sm:$0xff]
  %v550 = vld [vmem:[%s545 + $0x20] sm:$0xff]
  %v551 = vld [vmem:[%s545 + $0x28] sm:$0xff]
  %v552 = vld [vmem:[%s545 + $0x30] sm:$0xff]
  %v553 = vld [vmem:[%s545 + $0x38] sm:$0xff]
  %554 = vmatpush.msra.mxu0 0.0
  %555 = vmatpush.msra.mxu0 0.0
  %556 = vmatpush.msra.mxu0 0.0
  %557 = vmatpush.msra.mxu0 0.0
  %558 = vmatpush.msra.mxu0 0.0
  %559 = vmatpush.msra.mxu0 0.0
  %560 = vmatpush.msra.mxu0 0.0
  %561 = vmatpush.msra.mxu0 0.0
  %562 = vmatpush.msra.mxu0 %v553
  %563 = vmatpush.msra.mxu0 %v552
  %564 = vmatpush.msra.mxu0 %v551
  %565 = vmatpush.msra.mxu0 %v550
  %566 = vmatpush.msra.mxu0 %v549
  %567 = vmatpush.msra.mxu0 %v548
  %568 = vmatpush.msra.mxu0 %v547
  %569 = vmatpush.msra.mxu0 %v546
  %570 = vmatmul.f32.gmra.mxu0 %v234
  %v571 = vpop.f32.mrf.mxu0
  %v572 = vadd.f32 0.0, %v571
  %573 = vmatmul.f32.gmra.mxu0 %v237
  %v574 = vpop.f32.mrf.mxu0
  %v575 = vadd.f32 0.0, %v574
  %576 = vmatmul.f32.gmra.mxu0 %v240
  %v577 = vpop.f32.mrf.mxu0
  %v578 = vadd.f32 0.0, %v577
  %579 = vmatmul.f32.gmra.mxu0 %v243
  %v580 = vpop.f32.mrf.mxu0
  %v581 = vadd.f32 0.0, %v580
  %582 = vmatmul.f32.gmra.mxu0 %v246
  %v583 = vpop.f32.mrf.mxu0
  %v584 = vadd.f32 0.0, %v583
  %585 = vmatmul.f32.gmra.mxu0 %v249
  %v586 = vpop.f32.mrf.mxu0
  %v587 = vadd.f32 0.0, %v586
  %588 = vmatmul.f32.gmra.mxu0 %v252
  %v589 = vpop.f32.mrf.mxu0
  %v590 = vadd.f32 0.0, %v589
  %591 = vmatmul.f32.gmra.mxu0 %v255
  %v592 = vpop.f32.mrf.mxu0
  %v593 = vadd.f32 0.0, %v592
  %594 = vmatmul.f32.gmra.mxu0 %v258
  %v595 = vpop.f32.mrf.mxu0
  %v596 = vadd.f32 0.0, %v595
  %597 = vmatmul.f32.gmra.mxu0 %v261
  %v598 = vpop.f32.mrf.mxu0
  %v599 = vadd.f32 0.0, %v598
  %600 = vmatmul.f32.gmra.mxu0 %v264
  %v601 = vpop.f32.mrf.mxu0
  %v602 = vadd.f32 0.0, %v601
  %603 = vmatmul.f32.gmra.mxu0 %v267
  %v604 = vpop.f32.mrf.mxu0
  %v605 = vadd.f32 0.0, %v604
  %606 = vmatmul.f32.gmra.mxu0 %v270
  %v607 = vpop.f32.mrf.mxu0
  %v608 = vadd.f32 0.0, %v607
  %609 = vmatmul.f32.gmra.mxu0 %v273
  %v610 = vpop.f32.mrf.mxu0
  %v611 = vadd.f32 0.0, %v610
  %612 = vmatmul.f32.gmra.mxu0 %v276
  %v613 = vpop.f32.mrf.mxu0
  %v614 = vadd.f32 0.0, %v613
  %615 = vmatmul.f32.gmra.mxu0 %v279
  %v616 = vpop.f32.mrf.mxu0
  %v617 = vadd.f32 0.0, %v616
  %618 = vdwg.mxu0
  %s619 = scalar_lea.vmem %s3, 384
  %620 = vst.msk [vmem:[%s619] sm:$0xff] %vm346, %v572
  %621 = vst.msk [vmem:[%s619 + $0x8] sm:$0xff] %vm346, %v575
  %622 = vst.msk [vmem:[%s619 + $0x10] sm:$0xff] %vm346, %v578
  %623 = vst.msk [vmem:[%s619 + $0x18] sm:$0xff] %vm346, %v581
  %624 = vst.msk [vmem:[%s619 + $0x20] sm:$0xff] %vm346, %v584
  %625 = vst.msk [vmem:[%s619 + $0x28] sm:$0xff] %vm346, %v587
  %626 = vst.msk [vmem:[%s619 + $0x30] sm:$0xff] %vm346, %v590
  %627 = vst.msk [vmem:[%s619 + $0x38] sm:$0xff] %vm346, %v593
  %628 = vst.msk [vmem:[%s619 + $0x40] sm:$0xff] %vm346, %v596
  %629 = vst.msk [vmem:[%s619 + $0x48] sm:$0xff] %vm346, %v599
  %630 = vst.msk [vmem:[%s619 + $0x50] sm:$0xff] %vm346, %v602
  %631 = vst.msk [vmem:[%s619 + $0x58] sm:$0xff] %vm346, %v605
  %632 = vst.msk [vmem:[%s619 + $0x60] sm:$0xff] %vm346, %v608
  %633 = vst.msk [vmem:[%s619 + $0x68] sm:$0xff] %vm346, %v611
  %634 = vst.msk [vmem:[%s619 + $0x70] sm:$0xff] %vm346, %v614
  %635 = vst.msk [vmem:[%s619 + $0x78] sm:$0xff] %vm346, %v617
  // Predicated region
  $region14: #{tpu_custom_call.1} parent=0 // pred_check
    _
  $region15: #{tpu_custom_call.1} parent=0 // pred_check_branch
    %637 = sbr.rel (0) target = $region17
  $region16: #{tpu_custom_call.1} parent=0 // pred_region
    _
  $region17: #{tpu_custom_call.1} parent=0 // pred_fallthru
    _
  // Predicated region
  $region18: #{tpu_custom_call.1} parent=0 // pred_check
    _
  $region19: #{tpu_custom_call.1} parent=0 // pred_check_branch
    %639 = sbr.rel (0) target = $region21
  $region20: #{tpu_custom_call.1} parent=0 // pred_region
    _
  $region21: #{tpu_custom_call.1} parent=0 // pred_fallthru
    _

</llo_original>
